<compile_context>
chip_gen: v7x
topology: tpu7x:2x2x1
jax: 0.10.0
libtpu: 0.0.40
codegen_flags: <defaults>
</compile_context>

<pallas_src>
import jax
import jax.numpy as jnp
from jax.experimental import pallas as pl
from jax.experimental.pallas import tpu as pltpu


def _attention_kernel(x_ref, m_ref, w1_ref, b1_ref, w2_ref, b2_ref,
                      out_ref, attn_ref):
    # x_ref:   (BT, K, D)  knowledge vectors for this batch tile
    # m_ref:   (BT, K)     mask (lane-dense)
    # w1_ref:  (D, H), b1_ref: (1, H), w2_ref: (1, H)   -- VMEM resident
    # b2_ref:  (1,)        scalar bias in SMEM
    # out_ref: (BT, D)     weighted sum
    # attn_ref:(BT, K)     masked attention weights (lane-dense)
    bt, k, d = x_ref.shape

    x = x_ref[...].astype(jnp.float32)           # (BT, K, D)
    mask = m_ref[...]                            # (BT, K)
    w1 = w1_ref[...]                             # (D, H)
    b1 = b1_ref[...]                             # (1, H)
    w2 = w2_ref[...]                             # (1, H)
    b2 = b2_ref[0]                               # scalar (SMEM)

    # Linear(D->H) + tanh: one MXU matmul covering all BT*K rows.
    # (K % 8 == 0 keeps this reshape a free re-view of the (sublane, lane) layout.)
    x2 = x.reshape(bt * k, d)                                               # (BT*K, D)
    h = jnp.tanh(jnp.dot(x2, w1, preferred_element_type=jnp.float32) + b1)  # (BT*K, H)

    # Linear(H->1): elementwise mul + lane reduction (avoids an N=1 matmul).
    h3 = h.reshape(bt, k, h.shape[-1])                                      # (BT, K, H)
    logits = jnp.sum(h3 * w2, axis=-1) + b2                                 # (BT, K)

    # Softmax over K (torch Softmax(dim=1)), computed BEFORE masking.
    m_max = jnp.max(logits, axis=-1, keepdims=True)                         # (BT, 1)
    e = jnp.exp(logits - m_max)                                             # (BT, K)
    denom = jnp.sum(e, axis=-1, keepdims=True)                              # (BT, 1)
    attn = e * pl.reciprocal(denom, approx=False)                           # (BT, K)

    attn_masked = attn * mask                                               # (BT, K)
    attn_ref[...] = attn_masked

    # out[b, d] = sum_k attn_masked[b, k] * x[b, k, d]
    out_ref[...] = jnp.sum(attn_masked[:, :, None] * x, axis=1)             # (BT, D)


def attention_layer_forward(knowledge_vectors, knowledge_mask, params,
                            *, block_b=None):
    """knowledge_vectors: [B, K, D], knowledge_mask: [B, K].

    Returns (weighted_sum [B, D] f32, attention_weights [B, K] f32)."""
    B, K, D = knowledge_vectors.shape
    H = params["w1"].shape[1]

    # ---- pick a batch tile: fill the MXU M dim (~512 rows) but cap VMEM use ----
    if block_b is None:
        block_b = max(8, -(-512 // max(K, 1)))        # ceil(512 / K) rows target
        block_b = ((block_b + 7) // 8) * 8            # sublane aligned
        row_bytes = K * D * 4
        cap = max(8, ((4 << 20) // max(row_bytes, 1)) // 8 * 8)  # keep x tile <= ~4 MiB
        block_b = min(block_b, cap)
    bt = min(block_b, B)
    if bt < B and bt % 8:
        bt = ((bt + 7) // 8) * 8                      # tiled batch blocks need sublane alignment

    # ---- pad the batch so it tiles evenly (padded rows are masked out, sliced off) ----
    Bp = ((B + bt - 1) // bt) * bt
    kv = knowledge_vectors                            # no wrapper cast of the big input
    mk = knowledge_mask.astype(jnp.float32)
    if Bp != B:
        kv = jnp.pad(kv, ((0, Bp - B), (0, 0), (0, 0)))
        mk = jnp.pad(mk, ((0, Bp - B), (0, 0)))

    w1 = params["w1"].astype(jnp.float32)                     # (D, H)
    b1 = params["b1"].reshape(1, H).astype(jnp.float32)       # (1, H)
    w2 = params["w2"].reshape(1, H).astype(jnp.float32)       # (1, H)
    b2 = params["b2"].reshape(1).astype(jnp.float32)          # (1,)  -> SMEM scalar

    out_shapes = (
        jax.ShapeDtypeStruct((Bp, D), jnp.float32),
        jax.ShapeDtypeStruct((Bp, K), jnp.float32),
    )

    grid_spec = pltpu.PrefetchScalarGridSpec(
        num_scalar_prefetch=0,
        grid=(Bp // bt,),
        in_specs=[
            pl.BlockSpec((bt, K, D), lambda b: (b, 0, 0)),     # knowledge vectors
            pl.BlockSpec((bt, K), lambda b: (b, 0)),           # mask (lane-dense)
            pl.BlockSpec((D, H), lambda b: (0, 0)),            # w1 (resident)
            pl.BlockSpec((1, H), lambda b: (0, 0)),            # b1 (resident)
            pl.BlockSpec((1, H), lambda b: (0, 0)),            # w2 (resident)
            pl.BlockSpec(memory_space=pltpu.MemorySpace.SMEM), # b2 scalar
        ],
        out_specs=(
            pl.BlockSpec((bt, D), lambda b: (b, 0)),
            pl.BlockSpec((bt, K), lambda b: (b, 0)),
        ),
    )

    weighted_sum, attn = pl.pallas_call(
        _attention_kernel,
        out_shape=out_shapes,
        grid_spec=grid_spec,
        compiler_params=pltpu.CompilerParams(
            dimension_semantics=("parallel",)),    # v7x: shard batch loop across 2 TCs
    )(kv, mk, w1, b1, w2, b2)

    if Bp != B:
        weighted_sum = weighted_sum[:B]
        attn = attn[:B]
    return weighted_sum, attn


def _reference_forward(x, mask, params):
    # Pure-JAX reference mirroring the PyTorch module.
    h = jnp.tanh(jnp.einsum("bkd,dh->bkh", x, params["w1"]) + params["b1"])
    logits = jnp.einsum("bkh,h->bk", h, params["w2"]) + params["b2"]
    attn = jax.nn.softmax(logits, axis=1)          # [B, K]
    attn = attn * mask
    out = jnp.sum(attn[..., None] * x, axis=1)     # [B, D]
    return out, attn


if __name__ == "__main__":
    K, D, H = 8, 16, 32

    key = jax.random.PRNGKey(0)
    k1, k2, k3, k4, kx, km = jax.random.split(key, 6)

    # Deterministic synthetic parameters (shapes from nn.Linear(D,H) and nn.Linear(H,1)).
    params = {
        "w1": jax.random.normal(k1, (D, H), dtype=jnp.float32) * 0.1,
        "b1": jax.random.normal(k2, (H,), dtype=jnp.float32) * 0.1,
        "w2": jax.random.normal(k3, (H,), dtype=jnp.float32) * 0.1,
        "b2": jax.random.normal(k4, (), dtype=jnp.float32) * 0.1,
    }

    ok = True
    # Case 1: tiny batch, whole batch in one block (grid=(1,)).
    # Case 2: larger batch with an explicit tile -> multi-step grid + batch padding path.
    for (B, block_b) in ((2, None), (40, 16)):
        kb = jax.random.fold_in(kx, B)
        mb = jax.random.fold_in(km, B)
        knowledge_vectors = jax.random.normal(kb, (B, K, D), dtype=jnp.float32)
        knowledge_mask = (jax.random.uniform(mb, (B, K)) > 0.3).astype(jnp.float32)

        out, attn = attention_layer_forward(
            knowledge_vectors, knowledge_mask, params, block_b=block_b)
        jax.block_until_ready((out, attn))

        ref_out, ref_attn = _reference_forward(knowledge_vectors, knowledge_mask, params)
        ok &= bool(jnp.allclose(out, ref_out, atol=1e-5, rtol=1e-5))
        ok &= bool(jnp.allclose(attn, ref_attn, atol=1e-5, rtol=1e-5))

    assert ok
    print("KERNEL_OK")
</pallas_src>

<mosaic_0001>
module attributes {stable_mosaic.version = 11 : i64} {
  func.func @_attention_kernel(%arg0: i32, %arg1: memref<2x8x16xf32, #tpu.memory_space<vmem>>, %arg2: memref<2x8xf32, #tpu.memory_space<vmem>>, %arg3: memref<16x32xf32, #tpu.memory_space<vmem>>, %arg4: memref<1x32xf32, #tpu.memory_space<vmem>>, %arg5: memref<1x32xf32, #tpu.memory_space<vmem>>, %arg6: memref<1xf32, #tpu.memory_space<smem>>, %arg7: memref<2x16xf32, #tpu.memory_space<vmem>>, %arg8: memref<2x8xf32, #tpu.memory_space<vmem>>) attributes {dimension_semantics = [#tpu.dimension_semantics<parallel>], iteration_bounds = array<i64: 1>, scalar_prefetch = 0 : i64, scratch_operands = 0 : i64, tpu.core_type = #tpu.core_type<tc>, window_params = [{transform_indices = @transform_0, window_bounds = array<i64: 2, 8, 16>}, {transform_indices = @transform_1, window_bounds = array<i64: 2, 8>}, {pipeline_mode = #tpu.pipeline_mode<synchronous>, transform_indices = @transform_2, window_bounds = array<i64: 16, 32>}, {pipeline_mode = #tpu.pipeline_mode<synchronous>, transform_indices = @transform_3, window_bounds = array<i64: 1, 32>}, {pipeline_mode = #tpu.pipeline_mode<synchronous>, transform_indices = @transform_4, window_bounds = array<i64: 1, 32>}, {transform_indices = @transform_5, window_bounds = array<i64: 1>}, {transform_indices = @transform_6, window_bounds = array<i64: 2, 16>}, {transform_indices = @transform_7, window_bounds = array<i64: 2, 8>}]} {
    %c0 = arith.constant 0 : index
    %c0_0 = arith.constant 0 : index
    %c0_1 = arith.constant 0 : index
    %0 = vector.load %arg1[%c0, %c0_0, %c0_1] : memref<2x8x16xf32, #tpu.memory_space<vmem>>, vector<2x8x16xf32>
    %c0_2 = arith.constant 0 : index
    %c0_3 = arith.constant 0 : index
    %1 = vector.load %arg2[%c0_2, %c0_3] : memref<2x8xf32, #tpu.memory_space<vmem>>, vector<2x8xf32>
    %c0_4 = arith.constant 0 : index
    %c0_5 = arith.constant 0 : index
    %2 = vector.load %arg3[%c0_4, %c0_5] : memref<16x32xf32, #tpu.memory_space<vmem>>, vector<16x32xf32>
    %c0_6 = arith.constant 0 : index
    %c0_7 = arith.constant 0 : index
    %3 = vector.load %arg4[%c0_6, %c0_7] : memref<1x32xf32, #tpu.memory_space<vmem>>, vector<1x32xf32>
    %c0_8 = arith.constant 0 : index
    %c0_9 = arith.constant 0 : index
    %4 = vector.load %arg5[%c0_8, %c0_9] : memref<1x32xf32, #tpu.memory_space<vmem>>, vector<1x32xf32>
    %c0_10 = arith.constant 0 : index
    %5 = memref.load %arg6[%c0_10] : memref<1xf32, #tpu.memory_space<smem>>
    %6 = vector.shape_cast %0 : vector<2x8x16xf32> to vector<16x16xf32>
    %cst = arith.constant dense<0.000000e+00> : vector<16x32xf32>
    %7 = tpu.matmul %6, %2, %cst {dimension_numbers = #tpu.dot_dimension_numbers<[1], [0], [0], [1], [0, 0, 1, 1], [], []>} : vector<16x16xf32>, vector<16x32xf32>, vector<16x32xf32> -> vector<16x32xf32>
    %8 = vector.broadcast %3 : vector<1x32xf32> to vector<16x32xf32>
    %9 = arith.addf %7, %8 : vector<16x32xf32>
    %10 = math.tanh %9 : vector<16x32xf32>
    %11 = vector.shape_cast %10 : vector<16x32xf32> to vector<2x8x32xf32>
    %12 = vector.shape_cast %4 : vector<1x32xf32> to vector<1x1x32xf32>
    %13 = vector.broadcast %12 : vector<1x1x32xf32> to vector<2x8x32xf32>
    %14 = arith.mulf %11, %13 : vector<2x8x32xf32>
    %cst_11 = arith.constant dense<0.000000e+00> : vector<2x8xf32>
    %15 = vector.multi_reduction <add>, %14, %cst_11 [2] : vector<2x8x32xf32> to vector<2x8xf32>
    %16 = vector.broadcast %5 : f32 to vector<2x8xf32>
    %17 = arith.addf %15, %16 : vector<2x8xf32>
    %cst_12 = arith.constant dense<0xFF800000> : vector<2xf32>
    %18 = vector.multi_reduction <maximumf>, %17, %cst_12 [1] : vector<2x8xf32> to vector<2xf32>
    %19 = vector.shape_cast %18 : vector<2xf32> to vector<2x1xf32>
    %20 = vector.broadcast %19 : vector<2x1xf32> to vector<2x8xf32>
    %21 = arith.subf %17, %20 : vector<2x8xf32>
    %22 = math.exp %21 : vector<2x8xf32>
    %cst_13 = arith.constant dense<0.000000e+00> : vector<2xf32>
    %23 = vector.multi_reduction <add>, %22, %cst_13 [1] : vector<2x8xf32> to vector<2xf32>
    %24 = vector.shape_cast %23 : vector<2xf32> to vector<2x1xf32>
    %25 = tpu.reciprocal %24 : vector<2x1xf32> -> vector<2x1xf32>
    %26 = vector.broadcast %25 : vector<2x1xf32> to vector<2x8xf32>
    %27 = arith.mulf %22, %26 : vector<2x8xf32>
    %28 = arith.mulf %27, %1 : vector<2x8xf32>
    %c0_14 = arith.constant 0 : index
    %c0_15 = arith.constant 0 : index
    %29 = vector.load %arg8[%c0_14, %c0_15] : memref<2x8xf32, #tpu.memory_space<vmem>>, vector<2x8xf32>
    tpu.vector_store %arg8[%c0_14, %c0_15], %28 {strides = array<i32>} : memref<2x8xf32, #tpu.memory_space<vmem>>, vector<2x8xf32>,
    %30 = vector.shape_cast %28 : vector<2x8xf32> to vector<2x8x1xf32>
    %31 = vector.broadcast %30 : vector<2x8x1xf32> to vector<2x8x16xf32>
    %32 = arith.mulf %31, %0 : vector<2x8x16xf32>
    %cst_16 = arith.constant dense<0.000000e+00> : vector<2x16xf32>
    %33 = vector.multi_reduction <add>, %32, %cst_16 [1] : vector<2x8x16xf32> to vector<2x16xf32>
    %c0_17 = arith.constant 0 : index
    %c0_18 = arith.constant 0 : index
    %34 = vector.load %arg7[%c0_17, %c0_18] : memref<2x16xf32, #tpu.memory_space<vmem>>, vector<2x16xf32>
    tpu.vector_store %arg7[%c0_17, %c0_18], %33 {strides = array<i32>} : memref<2x16xf32, #tpu.memory_space<vmem>>, vector<2x16xf32>,
    return
  }
  func.func @transform_0(%arg0: i32) -> (i32, i32, i32) {
    %c0_i32 = arith.constant 0 : i32
    %c0_i32_0 = arith.constant 0 : i32
    %c0_i32_1 = arith.constant 0 : i32
    return %arg0, %c0_i32, %c0_i32_0 : i32, i32, i32
  }
  func.func @transform_1(%arg0: i32) -> (i32, i32) {
    %c0_i32 = arith.constant 0 : i32
    %c0_i32_0 = arith.constant 0 : i32
    return %arg0, %c0_i32 : i32, i32
  }
  func.func @transform_2(%arg0: i32) -> (i32, i32) {
    %c0_i32 = arith.constant 0 : i32
    %c0_i32_0 = arith.constant 0 : i32
    %c0_i32_1 = arith.constant 0 : i32
    return %c0_i32, %c0_i32_0 : i32, i32
  }
  func.func @transform_3(%arg0: i32) -> (i32, i32) {
    %c0_i32 = arith.constant 0 : i32
    %c0_i32_0 = arith.constant 0 : i32
    %c0_i32_1 = arith.constant 0 : i32
    return %c0_i32, %c0_i32_0 : i32, i32
  }
  func.func @transform_4(%arg0: i32) -> (i32, i32) {
    %c0_i32 = arith.constant 0 : i32
    %c0_i32_0 = arith.constant 0 : i32
    %c0_i32_1 = arith.constant 0 : i32
    return %c0_i32, %c0_i32_0 : i32, i32
  }
  func.func @transform_5(%arg0: i32) -> i32 {
    %c0_i32 = arith.constant 0 : i32
    %c0_i32_0 = arith.constant 0 : i32
    return %c0_i32 : i32
  }
  func.func @transform_6(%arg0: i32) -> (i32, i32) {
    %c0_i32 = arith.constant 0 : i32
    %c0_i32_0 = arith.constant 0 : i32
    return %arg0, %c0_i32 : i32, i32
  }
  func.func @transform_7(%arg0: i32) -> (i32, i32) {
    %c0_i32 = arith.constant 0 : i32
    %c0_i32_0 = arith.constant 0 : i32
    return %arg0, %c0_i32 : i32, i32
  }
}

</mosaic_0001>

<llo_original>
// kernel: tpu_custom_call.1
$region0: #{tpu_custom_call.1}
  #allocation0 [shape = 'u32[]', space=smem, size = 0x4, offset = 0x4, fixed_abs, tag = 'smem constant byte address 0x4 - core index']
  #allocation1 [shape = 'u32[144,128]{1,0:T(1,128)}', space=vmem, size = 0x12000, scoped, tag = 'internal scratch']
  #allocation2 [shape = 'f32[1]{0:T(128)S(6)}', space=smem, size = 0x200, scoped, tag = 'scoped memory for tpu_custom_call.1']
  %s0 = inlined_call_operand.hbm [shape: f32[2,8,16], index: 0, kind: input, shape index: {}]
  %s1 = inlined_call_operand.vmem [shape: f32[2,8], index: 1, kind: input, shape index: {}]
  %s2 = inlined_call_operand.hbm [shape: f32[16,32], index: 2, kind: input, shape index: {}]
  %s3 = inlined_call_operand.vmem [shape: f32[1,32], index: 3, kind: input, shape index: {}]
  %s4 = inlined_call_operand.vmem [shape: f32[1,32], index: 4, kind: input, shape index: {}]
  %s5 = inlined_call_operand.<no memory space> [shape: f32[1], index: 5, kind: input, shape index: {}]
  %s6 = inlined_call_operand.hbm [shape: f32[2,16], index: 6, kind: output, shape index: {0}]
  %s7 = inlined_call_operand.hbm [shape: f32[2,8], index: 7, kind: output, shape index: {1}]
  %8 = xla_tuple %s6, %s7
  %s9 = sld [smem:[#allocation0]]
  $region50: #{tpu_custom_call.1} parent=0
    _
  %s11 = ssub.s32 1, %s9
  %s12 = scalar_select 0, %s11, %s9
  %13 = sst [smem:[#allocation2]] %s5
  $region1: #{tpu_custom_call.1} parent=0
    #allocation3 [shape = 'u8[8192]{0}', space=vmem, size = 0x2000, scoped, tag = 'input window, operand 0, single buffered']
    #allocation4 [shape = 's32[1]{0}', space=sflag, size = 0x4, scoped, tag = 'scoped memory for tpu_custom_call.1']
    #allocation5 [shape = 's32[1]{0}', space=sflag, size = 0x4, scoped, tag = 'scoped memory for tpu_custom_call.1']
    #allocation6 [shape = 'u8[8192]{0}', space=vmem, size = 0x2000, scoped, tag = 'input window, operand 2, single buffered']
    #allocation7 [shape = 's32[1]{0}', space=sflag, size = 0x4, scoped, tag = 'scoped memory for tpu_custom_call.1']
    #allocation8 [shape = 'u8[1024]{0}', space=vmem, size = 0x400, scoped, tag = 'output window, operand 0, single buffered']
    #allocation9 [shape = 'u8[1024]{0}', space=vmem, size = 0x400, scoped, tag = 'output window, operand 1, single buffered']
    #allocation10 [shape = 's32[1]{0}', space=sflag, size = 0x4, scoped, tag = 'scoped memory for tpu_custom_call.1']
    %14 = vsyncpa [#allocation4], 0
    %15 = vsyncpa [#allocation7], 0
    %16 = vsyncpa [#allocation5], 0
    %17 = vsyncpa [#allocation10], 0
    // Predicated region
    $region2: #{tpu_custom_call.1} parent=1 // pred_check
      _
    $region3: #{tpu_custom_call.1} parent=1 // pred_check_branch
      %19 = sbr.rel (0) target = $region5
    $region4: #{tpu_custom_call.1} parent=1 // pred_region
      %s21 = ssub.s32 256, 256
      %22 = vsyncadd [#allocation4], %s21
      %s23 = sshll.u32 [#allocation3], 4
      %s24 = int_to_ptr.vmem [resolvable:$true] %s23
      %29 = dma.hbm_to_vmem [thread:$0]  %s0, 256, %s24, [#allocation4], 128, 128, 8
    $region5: #{tpu_custom_call.1} parent=1 // pred_fallthru
      _
    // Predicated region
    $region6: #{tpu_custom_call.1} parent=1 // pred_check
      _
    $region7: #{tpu_custom_call.1} parent=1 // pred_check_branch
      %31 = sbr.rel (0) target = $region9
    $region8: #{tpu_custom_call.1} parent=1 // pred_region
      _
    $region9: #{tpu_custom_call.1} parent=1 // pred_fallthru
      _
    // Predicated region
    $region10: #{tpu_custom_call.1} parent=1 // pred_check
      _
    $region11: #{tpu_custom_call.1} parent=1 // pred_check_branch
      %33 = sbr.rel (0) target = $region13
    $region12: #{tpu_custom_call.1} parent=1 // pred_region
      %s35 = ssub.s32 256, 256
      %36 = vsyncadd [#allocation7], %s35
      %s37 = sshll.u32 [#allocation6], 4
      %s38 = int_to_ptr.vmem [resolvable:$true] %s37
      %43 = dma.hbm_to_vmem [thread:$0]  %s2, 256, %s38, [#allocation7], 128, 128, 8
    $region13: #{tpu_custom_call.1} parent=1 // pred_fallthru
      _
    // Predicated region
    $region14: #{tpu_custom_call.1} parent=1 // pred_check
      _
    $region15: #{tpu_custom_call.1} parent=1 // pred_check_branch
      %45 = sbr.rel (0) target = $region17
    $region16: #{tpu_custom_call.1} parent=1 // pred_region
      _
    $region17: #{tpu_custom_call.1} parent=1 // pred_fallthru
      _
    // Predicated region
    $region18: #{tpu_custom_call.1} parent=1 // pred_check
      _
    $region19: #{tpu_custom_call.1} parent=1 // pred_check_branch
      %47 = sbr.rel (0) target = $region21
    $region20: #{tpu_custom_call.1} parent=1 // pred_region
      _
    $region21: #{tpu_custom_call.1} parent=1 // pred_fallthru
      _
    // Predicated region
    $region22: #{tpu_custom_call.1} parent=1 // pred_check
      _
    $region23: #{tpu_custom_call.1} parent=1 // pred_check_branch
      %49 = sbr.rel (0) target = $region25
    $region24: #{tpu_custom_call.1} parent=1 // pred_region
      _
    $region25: #{tpu_custom_call.1} parent=1 // pred_fallthru
      _
    // Predicated region
    $region26: #{tpu_custom_call.1} parent=1 // pred_check
      _
    $region27: #{tpu_custom_call.1} parent=1 // pred_check_branch
      %51 = sbr.rel (0) target = $region29
    $region28: #{tpu_custom_call.1} parent=1 // pred_region
      %52 = dma.done [#allocation4], 256
    $region29: #{tpu_custom_call.1} parent=1 // pred_fallthru
      _
    // Predicated region
    $region30: #{tpu_custom_call.1} parent=1 // pred_check
      _
    $region31: #{tpu_custom_call.1} parent=1 // pred_check_branch
      %54 = sbr.rel (0) target = $region33
    $region32: #{tpu_custom_call.1} parent=1 // pred_region
      %55 = dma.done [#allocation7], 256
    $region33: #{tpu_custom_call.1} parent=1 // pred_fallthru
      _
    %v56 = vld [vmem:[#allocation3] sm:$0xff]
    %v57 = vld [vmem:[#allocation3 + $0x8] sm:$0xff]
    %v58 = vld [vmem:[%s1] sm:$0x3]
    %v59 = vld [vmem:[#allocation6] sm:$0xff]
    %v60 = vld [vmem:[#allocation6 + $0x8] sm:$0xff]
    %v61 = vld [vmem:[%s3] sm:$0x1]
    %v62 = vld [vmem:[%s4] sm:$0x1]
    %s63 = sld [smem:[#allocation2]]
    %v65 = vlaneseq
    %v66 = vshrl.u32 %v65, 7
    %v67 = vsub.s32 0, %v66
    %v68 = vrot.slane %v61, %v67
    %vm70 = vcmask 130048
    %v72 = vsel %vm70, %v56, 0
    %v75 = vsel %vm70, %v57, 0
    %77 = vmatprep.subr.mxu0 0.0
    %78 = vmatpush1.msra.mxu0 %v59
    %79 = vmatprep.subr.mxu0 0.0
    %80 = vmatpush1.msra.mxu0 %v60
    %81 = vmatprep.subr.mxu0 0.0
    %82 = vmatpush1.msra.mxu0 0.0
    %83 = vmatprep.subr.mxu0 0.0
    %84 = vmatpush1.msra.mxu0 0.0
    %85 = vmatprep.subr.mxu0 0.0
    %86 = vmatpush1.msra.mxu0 0.0
    %87 = vmatprep.subr.mxu0 0.0
    %88 = vmatpush1.msra.mxu0 0.0
    %89 = vmatprep.subr.mxu0 0.0
    %90 = vmatpush1.msra.mxu0 0.0
    %91 = vmatprep.subr.mxu0 0.0
    %92 = vmatpush1.msra.mxu0 0.0
    %93 = vmatprep.subr.mxu0 0.0
    %94 = vmatpush1.msra.mxu0 0.0
    %95 = vmatprep.subr.mxu0 0.0
    %96 = vmatpush1.msra.mxu0 0.0
    %97 = vmatprep.subr.mxu0 0.0
    %98 = vmatpush1.msra.mxu0 0.0
    %99 = vmatprep.subr.mxu0 0.0
    %100 = vmatpush1.msra.mxu0 0.0
    %101 = vmatprep.subr.mxu0 0.0
    %102 = vmatpush1.msra.mxu0 0.0
    %103 = vmatprep.subr.mxu0 0.0
    %104 = vmatpush1.msra.mxu0 0.0
    %105 = vmatprep.subr.mxu0 0.0
    %106 = vmatpush1.msra.mxu0 0.0
    %107 = vmatprep.subr.mxu0 0.0
    %108 = vmatpush1.msra.mxu0 0.0
    %109 = vmatprep.subr.mxu0 0.0
    %110 = vmatpush1.msra.mxu0 0.0
    %111 = vmatprep.subr.mxu0 0.0
    %112 = vmatpush1.msra.mxu0 0.0
    %113 = vmatprep.subr.mxu0 0.0
    %114 = vmatpush1.msra.mxu0 0.0
    %115 = vmatprep.subr.mxu0 0.0
    %116 = vmatpush1.msra.mxu0 0.0
    %117 = vmatprep.subr.mxu0 0.0
    %118 = vmatpush1.msra.mxu0 0.0
    %119 = vmatprep.subr.mxu0 0.0
    %120 = vmatpush1.msra.mxu0 0.0
    %121 = vmatprep.subr.mxu0 0.0
    %122 = vmatpush1.msra.mxu0 0.0
    %123 = vmatprep.subr.mxu0 0.0
    %124 = vmatpush1.msra.mxu0 0.0
    %125 = vmatprep.subr.mxu0 0.0
    %126 = vmatpush1.msra.mxu0 0.0
    %127 = vmatprep.subr.mxu0 0.0
    %128 = vmatpush1.msra.mxu0 0.0
    %129 = vmatprep.subr.mxu0 0.0
    %130 = vmatpush1.msra.mxu0 0.0
    %131 = vmatprep.subr.mxu0 0.0
    %132 = vmatpush1.msra.mxu0 0.0
    %133 = vmatprep.subr.mxu0 0.0
    %134 = vmatpush1.msra.mxu0 0.0
    %135 = vmatprep.subr.mxu0 0.0
    %136 = vmatpush1.msra.mxu0 0.0
    %137 = vmatprep.subr.mxu0 0.0
    %138 = vmatpush1.msra.mxu0 0.0
    %139 = vmatprep.subr.mxu0 0.0
    %140 = vmatpush1.msra.mxu0 0.0
    %141 = vmatprep.mubr.f32.mxu0 0.0
    %142 = vmatmul.mubr.f32.gmra.mrb[0].mxu0 %v72
    %v143 = vpop.f32.mrb[0].mxu0
    %v144 = vadd.f32 %v68, %v143
    %v145 = vpop.f32.mrb[0].mxu0
    %146 = vmatprep.mubr.f32.mxu0 0.0
    %147 = vmatmul.mubr.f32.gmra.mrb[0].mxu0 %v75
    %v148 = vpop.f32.mrb[0].mxu0
    %v149 = vadd.f32 %v68, %v148
    %v150 = vpop.f32.mrb[0].mxu0
    %151 = vdwg.mxu0
    %v152 = vtanh.pop %v144
    %v153 = vtanh.pop %v149
    %v155 = vlaneseq
    %v156 = vshrl.u32 %v155, 7
    %v157 = vsub.s32 0, %v156
    %v158 = vrot.slane %v62, %v157
    %v160 = vmul.f32 %v152, %v158
    %v161 = vmul.f32 %v153, %v158
    %vm162 = vcmask 261120
    %v163 = vsel %vm162, %v160, 0.0
    %164 = vadd.xlane.f32.xlu0 %v163
    %v165 = vpop.xlane.xlu0 %164
    %v166 = vsel %vm162, %v161, 0.0
    %167 = vadd.xlane.f32.xlu0 %v166
    %v168 = vpop.xlane.xlu0 %167
    %v169 = vstv %s63
    %v170 = vadd.f32 %v165, %v169
    %v171 = vadd.f32 %v168, %v169
    %v174 = vlaneseq
    %v175 = vand.u32 %v174, 127
    %v176 = vlaneseq
    %v177 = vshrl.u32 %v176, 7
    %v178 = vsub.s32 %v175, %v177
    %v179 = vrot.slane %v170, %v178
    %v180 = vlaneseq
    %v181 = vshrl.u32 %v180, 7
    %v182 = vsub.s32 %v175, %v181
    %v183 = vrot.slane %v171, %v182
    %vm184 = vcmask 1041409
    %v185 = vsel %vm184, %v183, %v179
    %vm187 = vcmask 58368
    %v188 = vsel %vm187, %v185, -inf
    %189 = vmax.xlane.f32.xlu0 %v188
    %v190 = vpop.xlane.xlu0 %189
    %v192 = vlaneseq
    %v193 = vshrl.u32 %v192, 7
    %v194 = vsub.s32 0, %v193
    %v195 = vrot.slane %v190, %v194
    %v196 = vlaneseq
    %v197 = vshrl.u32 %v196, 7
    %v198 = vsub.s32 1, %v197
    %v199 = vrot.slane %v190, %v198
    %v202 = vsub.f32 %v170, %v195
    %v203 = vsub.f32 %v171, %v199
    %v204 = vmul.f32 %v202, 1.442695
    %v205 = vpow.pop %v204
    %v206 = vmul.f32 %v203, 1.442695
    %v207 = vpow.pop %v206
    %210 = vset.pattern.permute.xlu0 0
    %211 = vperm.xlu0 %210, %v205
    %v212 = vpop.permute.xlu0 %211
    %213 = vset.pattern.permute.xlu0 0
    %214 = vperm.xlu0 %213, %v207
    %v215 = vpop.permute.xlu0 %214
    %v216 = vlaneseq
    %v217 = vshrl.u32 %v216, 7
    %v218 = vsub.s32 %v175, %v217
    %v219 = vrot.slane %v212, %v218
    %v220 = vlaneseq
    %v221 = vshrl.u32 %v220, 7
    %v222 = vsub.s32 %v175, %v221
    %v223 = vrot.slane %v215, %v222
    %v224 = vsel %vm184, %v223, %v219
    %v226 = vsel %vm187, %v224, 0.0
    %227 = vadd.xlane.f32.xlu0 %v226
    %v228 = vpop.xlane.xlu0 %227
    %v229 = vrcp.pop %v228
    %v231 = vlaneseq
    %v232 = vshrl.u32 %v231, 7
    %v233 = vsub.s32 0, %v232
    %v234 = vrot.slane %v229, %v233
    %v235 = vlaneseq
    %v236 = vshrl.u32 %v235, 7
    %v237 = vsub.s32 1, %v236
    %v238 = vrot.slane %v229, %v237
    %v241 = vmul.f32 %v205, %v234
    %v242 = vmul.f32 %v207, %v238
    %v244 = vlaneseq
    %v245 = vshrl.u32 %v244, 7
    %v246 = vsub.s32 0, %v245
    %v247 = vrot.slane %v58, %v246
    %249 = vbcast.lane.b32.xlu0 %v247, 256
    %v250 = vpop.permute.xlu0 %249
    %v251 = vlaneseq
    %v252 = vshrl.u32 %v251, 7
    %v253 = vsub.s32 1, %v252
    %v254 = vrot.slane %v58, %v253
    %256 = vbcast.lane.b32.xlu0 %v254, 256
    %v257 = vpop.permute.xlu0 %256
    %v260 = vmul.f32 %v241, %v250
    %v261 = vmul.f32 %v242, %v257
    %264 = vset.pattern.permute.xlu0 0
    %265 = vperm.xlu0 %264, %v260
    %v266 = vpop.permute.xlu0 %265
    %267 = vset.pattern.permute.xlu0 0
    %268 = vperm.xlu0 %267, %v261
    %v269 = vpop.permute.xlu0 %268
    %v270 = vlaneseq
    %v271 = vshrl.u32 %v270, 7
    %v272 = vsub.s32 %v175, %v271
    %v273 = vrot.slane %v266, %v272
    %v274 = vlaneseq
    %v275 = vshrl.u32 %v274, 7
    %v276 = vsub.s32 %v175, %v275
    %v277 = vrot.slane %v269, %v276
    %v278 = vsel %vm184, %v277, %v273
    %280 = vst.msk [vmem:[#allocation9] sm:$0x3] %vm187, %v278
    %v283 = vmul.f32 %v266, %v56
    %v284 = vmul.f32 %v269, %v57
    %v285 = vsel %vm70, %v283, 0.0
    %v286 = vrot.slane %v285, 4
    %v287 = vadd.f32 %v285, %v286
    %v288 = vrot.slane %v287, 2
    %v289 = vadd.f32 %v287, %v288
    %v290 = vrot.slane %v289, 1
    %v291 = vadd.f32 %v289, %v290
    %v292 = vsel %vm70, %v284, 0.0
    %v293 = vrot.slane %v292, 4
    %v294 = vadd.f32 %v292, %v293
    %v295 = vrot.slane %v294, 2
    %v296 = vadd.f32 %v294, %v295
    %v297 = vrot.slane %v296, 1
    %v298 = vadd.f32 %v296, %v297
    %v301 = vsel %vm184, %v298, %v291
    %vm303 = vcmask 123904
    %304 = vst.msk [vmem:[#allocation8] sm:$0x3] %vm303, %v301
    // Predicated region
    $region34: #{tpu_custom_call.1} parent=1 // pred_check
      _
    $region35: #{tpu_custom_call.1} parent=1 // pred_check_branch
      %306 = sbr.rel (0) target = $region37
    $region36: #{tpu_custom_call.1} parent=1 // pred_region
      %s308 = ssub.s32 32, 32
      %309 = vsyncadd [#allocation5], %s308
      %s311 = sshll.u32 [#allocation8], 4
      %s312 = int_to_ptr.vmem [resolvable:$true] %s311
      %314 = dma.vmem_to_hbm [thread:$0]  %s312, 32, %s6, [#allocation5]
    $region37: #{tpu_custom_call.1} parent=1 // pred_fallthru
      _
    // Predicated region
    $region38: #{tpu_custom_call.1} parent=1 // pred_check
      _
    $region39: #{tpu_custom_call.1} parent=1 // pred_check_branch
      %316 = sbr.rel (0) target = $region41
    $region40: #{tpu_custom_call.1} parent=1 // pred_region
      %s318 = ssub.s32 32, 32
      %319 = vsyncadd [#allocation10], %s318
      %s321 = sshll.u32 [#allocation9], 4
      %s322 = int_to_ptr.vmem [resolvable:$true] %s321
      %324 = dma.vmem_to_hbm [thread:$0]  %s322, 32, %s7, [#allocation10]
    $region41: #{tpu_custom_call.1} parent=1 // pred_fallthru
      _
    // Predicated region
    $region42: #{tpu_custom_call.1} parent=1 // pred_check
      _
    $region43: #{tpu_custom_call.1} parent=1 // pred_check_branch
      %326 = sbr.rel (0) target = $region45
    $region44: #{tpu_custom_call.1} parent=1 // pred_region
      %327 = dma.done [#allocation5], 32
    $region45: #{tpu_custom_call.1} parent=1 // pred_fallthru
      _
    // Predicated region
    $region46: #{tpu_custom_call.1} parent=1 // pred_check
      _
    $region47: #{tpu_custom_call.1} parent=1 // pred_check_branch
      %329 = sbr.rel (0) target = $region49
    $region48: #{tpu_custom_call.1} parent=1 // pred_region
      %330 = dma.done [#allocation10], 32
    $region49: #{tpu_custom_call.1} parent=1 // pred_fallthru
      _
    %331 = vsyncpa [#allocation4], 1
    %332 = vsyncpa [#allocation7], 1
    %333 = vsyncpa [#allocation5], 1
    %334 = vsyncpa [#allocation10], 1

</llo_original>
